<compile_context>
chip_gen: v7x
topology: tpu7x:2x2x1
jax: 0.10.0
libtpu: 0.0.40
codegen_flags: <defaults>
</compile_context>

<pallas_src>
import functools

import jax
import jax.numpy as jnp
from jax import lax
from jax.experimental import pallas as pl
from jax.experimental.pallas import tpu as pltpu


# ------------------------------- kernel body -------------------------------

def _layernorm_kernel(x_ref, g_ref, b_ref, o_ref, *, eps):
    # x_ref: (TM, D)   g_ref/b_ref: (1, D)   o_ref: (TM, D)
    x = x_ref[...].astype(jnp.float32)
    # Single pass over the lanes: mean and mean of squares -> variance.
    # Kept in f32 so the E[x^2] - mean^2 cancellation is benign.
    mean = jnp.mean(x, axis=-1, keepdims=True)
    mean_sq = jnp.mean(x * x, axis=-1, keepdims=True)
    var = mean_sq - mean * mean
    inv = lax.rsqrt(var + eps)                        # EUP slot, ~free
    y = (x - mean) * inv
    y = y * g_ref[...].astype(jnp.float32) + b_ref[...].astype(jnp.float32)
    o_ref[...] = y.astype(o_ref.dtype)


# ----------------------------- tiling heuristics ----------------------------

_TILE_VMEM_BUDGET = 12 * 1024 * 1024   # bytes for pipelined row tiles + temps
_VMEM_LIMIT_BYTES = 32 * 1024 * 1024   # safe on v5e/v6e (128 MiB) and v7x (64 MiB)
_MERGE_ROW_THRESHOLD = 2048            # merge the two LN calls below this M


def _sublane_multiple(dtype):
    # Native second-minor packing: 8 rows (4B), 16 rows (2B), 32 rows (1B).
    return max(8, 32 // jnp.dtype(dtype).itemsize)


def _pick_row_tile(m, d, in_dtype, out_dtype):
    """VMEM-aware row tile: fits the budget, >=2 grid steps whenever possible."""
    sub = _sublane_multiple(in_dtype)
    # Per tile row: double-buffered input + output tiles, plus ~2 f32
    # intermediates the compiler materializes for the normalized value.
    per_row = (2 * d * jnp.dtype(in_dtype).itemsize
               + 2 * d * jnp.dtype(out_dtype).itemsize
               + 2 * d * 4)
    tm = max(sub, min(1024, _TILE_VMEM_BUDGET // max(per_row, 1)))
    tm = (tm // sub) * sub
    # Guarantee >=2 grid steps when m allows it: a one-step grid disables both
    # software pipelining and v7x megacore sharding.
    if tm >= m and m > sub:
        tm = max(sub, (pl.cdiv(m, 2) // sub) * sub)
    return tm


# --------------------------------- wrappers ---------------------------------

def _layernorm_2d(x2d, g2d, b2d, *, eps, out_dtype):
    m, d = x2d.shape
    tm = _pick_row_tile(m, d, x2d.dtype, out_dtype)
    grid = (pl.cdiv(m, tm),)
    # TODO(synk): if the production hidden dim is not a multiple of 128
    # (demo D=32), output stores are lane-masked (vst.msk); a lane-repacking
    # layout would be needed to make them fully lane-dense.
    return pl.pallas_call(
        functools.partial(_layernorm_kernel, eps=eps),
        out_shape=jax.ShapeDtypeStruct((m, d), out_dtype),
        grid_spec=pl.GridSpec(
            grid=grid,
            in_specs=[
                pl.BlockSpec((tm, d), lambda i: (i, 0)),   # row tile (pipelined)
                pl.BlockSpec((1, d), lambda i: (0, 0)),    # gamma (VMEM-resident)
                pl.BlockSpec((1, d), lambda i: (0, 0)),    # beta  (VMEM-resident)
            ],
            out_specs=pl.BlockSpec((tm, d), lambda i: (i, 0)),
        ),
        compiler_params=pltpu.CompilerParams(
            dimension_semantics=("parallel",),             # megacore on v7x
            vmem_limit_bytes=_VMEM_LIMIT_BYTES,
        ),
    )(x2d, g2d, b2d)


def layernorm_pallas(x, gamma, beta, *, eps=1e-5, out_dtype=None):
    """LayerNorm over the last axis, matching torch.nn.LayerNorm(dim)."""
    d = x.shape[-1]
    m = x.size // d
    out_dtype = x.dtype if out_dtype is None else out_dtype
    out = _layernorm_2d(x.reshape(m, d), gamma.reshape(1, d),
                        beta.reshape(1, d), eps=eps, out_dtype=out_dtype)
    return out.reshape(x.shape)


def prenorm2_forward(x, x2, gamma, beta, fn, *, eps=1e-5, norm_dtype=None,
                     **kwargs):
    """Replicates PreNorm2.forward: fn(norm(x), norm(x2), **kwargs)."""
    d = x.shape[-1]
    m1 = x.size // d
    m2 = x2.size // d
    g2d = gamma.reshape(1, d)
    b2d = beta.reshape(1, d)
    dt = x.dtype if norm_dtype is None else norm_dtype

    if x.dtype == x2.dtype and (m1 + m2) <= _MERGE_ROW_THRESHOLD:
        # Small-M path: both streams share one pallas_call / one pipeline so
        # launch + fill/drain overhead is paid once; the row concat is
        # negligible at these sizes.
        both = jnp.concatenate([x.reshape(m1, d), x2.reshape(m2, d)], axis=0)
        normed = _layernorm_2d(both, g2d, b2d, eps=eps, out_dtype=dt)
        nx = normed[:m1].reshape(x.shape)
        nx2 = normed[m1:].reshape(x2.shape)
    else:
        nx = _layernorm_2d(x.reshape(m1, d), g2d, b2d,
                           eps=eps, out_dtype=dt).reshape(x.shape)
        nx2 = _layernorm_2d(x2.reshape(m2, d), g2d, b2d,
                            eps=eps, out_dtype=dt).reshape(x2.shape)

    # TODO(synk): `fn` is an arbitrary user-supplied submodule (e.g. cross
    # attention); it has no fixed definition here and cannot be fused into the
    # LayerNorm kernel, so it is applied in plain JAX on the kernel outputs.
    return fn(nx, nx2, **kwargs)


if __name__ == "__main__":
    # Small shapes consistent with the module: (batch, seq, hidden).
    B, N1, N2, D = 2, 8, 8, 32

    key = jax.random.PRNGKey(0)
    kx, kx2, kg, kb = jax.random.split(key, 4)

    x = jax.random.normal(kx, (B, N1, D), jnp.float32)
    x2 = jax.random.normal(kx2, (B, N2, D), jnp.float32)
    # nn.LayerNorm default init is weight=1, bias=0; perturb so the affine
    # part is actually exercised.
    gamma = jnp.ones((D,), jnp.float32) + 0.1 * jax.random.normal(kg, (D,), jnp.float32)
    beta = 0.1 * jax.random.normal(kb, (D,), jnp.float32)

    # Stand-in for the wrapped `fn`: a simple cross interaction between the
    # two normalized streams (plain JAX, outside the kernel).
    def fn(a, b):
        return jnp.einsum("bnd,bmd->bnm", a, b)

    fwd = jax.jit(lambda xa, xb, g, be: prenorm2_forward(xa, xb, g, be, fn))
    out = jax.block_until_ready(fwd(x, x2, gamma, beta))

    # Pure-JAX reference of the whole forward pass.
    def ln_ref(v):
        mu = jnp.mean(v, axis=-1, keepdims=True)
        var = jnp.mean((v - mu) ** 2, axis=-1, keepdims=True)
        return (v - mu) / jnp.sqrt(var + 1e-5) * gamma + beta

    ref = fn(ln_ref(x), ln_ref(x2))

    assert out.shape == ref.shape == (B, N1, N2), (out.shape, ref.shape)
    assert jnp.allclose(out, ref, atol=2e-4, rtol=2e-5), float(
        jnp.max(jnp.abs(out - ref))
    )

    print("KERNEL_OK")
</pallas_src>

<mosaic_0001>
module attributes {stable_mosaic.version = 11 : i64} {
  func.func @_layernorm_kernel(%arg0: i32, %arg1: memref<16x32xf32, #tpu.memory_space<vmem>>, %arg2: memref<1x32xf32, #tpu.memory_space<vmem>>, %arg3: memref<1x32xf32, #tpu.memory_space<vmem>>, %arg4: memref<16x32xf32, #tpu.memory_space<vmem>>) attributes {dimension_semantics = [#tpu.dimension_semantics<parallel>], iteration_bounds = array<i64: 2>, scalar_prefetch = 0 : i64, scratch_operands = 0 : i64, tpu.core_type = #tpu.core_type<tc>, window_params = [{transform_indices = @transform_0, window_bounds = array<i64: 16, 32>}, {pipeline_mode = #tpu.pipeline_mode<synchronous>, transform_indices = @transform_1, window_bounds = array<i64: 1, 32>}, {pipeline_mode = #tpu.pipeline_mode<synchronous>, transform_indices = @transform_2, window_bounds = array<i64: 1, 32>}, {transform_indices = @transform_3, window_bounds = array<i64: 16, 32>}]} {
    %c0 = arith.constant 0 : index
    %c0_0 = arith.constant 0 : index
    %0 = vector.load %arg1[%c0, %c0_0] : memref<16x32xf32, #tpu.memory_space<vmem>>, vector<16x32xf32>
    %cst = arith.constant dense<0.000000e+00> : vector<16xf32>
    %1 = vector.multi_reduction <add>, %0, %cst [1] : vector<16x32xf32> to vector<16xf32>
    %2 = vector.shape_cast %1 : vector<16xf32> to vector<16x1xf32>
    %cst_1 = arith.constant 3.200000e+01 : f32
    %3 = vector.broadcast %cst_1 : f32 to vector<16x1xf32>
    %4 = arith.divf %2, %3 : vector<16x1xf32>
    %5 = arith.mulf %0, %0 : vector<16x32xf32>
    %cst_2 = arith.constant dense<0.000000e+00> : vector<16xf32>
    %6 = vector.multi_reduction <add>, %5, %cst_2 [1] : vector<16x32xf32> to vector<16xf32>
    %7 = vector.shape_cast %6 : vector<16xf32> to vector<16x1xf32>
    %cst_3 = arith.constant 3.200000e+01 : f32
    %8 = vector.broadcast %cst_3 : f32 to vector<16x1xf32>
    %9 = arith.divf %7, %8 : vector<16x1xf32>
    %10 = arith.mulf %4, %4 : vector<16x1xf32>
    %11 = arith.subf %9, %10 : vector<16x1xf32>
    %cst_4 = arith.constant 9.99999974E-6 : f32
    %12 = vector.broadcast %cst_4 : f32 to vector<16x1xf32>
    %13 = arith.addf %11, %12 : vector<16x1xf32>
    %14 = math.rsqrt %13 : vector<16x1xf32>
    %15 = vector.broadcast %4 : vector<16x1xf32> to vector<16x32xf32>
    %16 = arith.subf %0, %15 : vector<16x32xf32>
    %17 = vector.broadcast %14 : vector<16x1xf32> to vector<16x32xf32>
    %18 = arith.mulf %16, %17 : vector<16x32xf32>
    %c0_5 = arith.constant 0 : index
    %c0_6 = arith.constant 0 : index
    %19 = vector.load %arg2[%c0_5, %c0_6] : memref<1x32xf32, #tpu.memory_space<vmem>>, vector<1x32xf32>
    %20 = vector.broadcast %19 : vector<1x32xf32> to vector<16x32xf32>
    %21 = arith.mulf %18, %20 : vector<16x32xf32>
    %c0_7 = arith.constant 0 : index
    %c0_8 = arith.constant 0 : index
    %22 = vector.load %arg3[%c0_7, %c0_8] : memref<1x32xf32, #tpu.memory_space<vmem>>, vector<1x32xf32>
    %23 = vector.broadcast %22 : vector<1x32xf32> to vector<16x32xf32>
    %24 = arith.addf %21, %23 : vector<16x32xf32>
    %c0_9 = arith.constant 0 : index
    %c0_10 = arith.constant 0 : index
    %25 = vector.load %arg4[%c0_9, %c0_10] : memref<16x32xf32, #tpu.memory_space<vmem>>, vector<16x32xf32>
    tpu.vector_store %arg4[%c0_9, %c0_10], %24 {strides = array<i32>} : memref<16x32xf32, #tpu.memory_space<vmem>>, vector<16x32xf32>,
    return
  }
  func.func @transform_0(%arg0: i32) -> (i32, i32) {
    %c0_i32 = arith.constant 0 : i32
    %c0_i32_0 = arith.constant 0 : i32
    return %arg0, %c0_i32 : i32, i32
  }
  func.func @transform_1(%arg0: i32) -> (i32, i32) {
    %c0_i32 = arith.constant 0 : i32
    %c0_i32_0 = arith.constant 0 : i32
    %c0_i32_1 = arith.constant 0 : i32
    return %c0_i32, %c0_i32_0 : i32, i32
  }
  func.func @transform_2(%arg0: i32) -> (i32, i32) {
    %c0_i32 = arith.constant 0 : i32
    %c0_i32_0 = arith.constant 0 : i32
    %c0_i32_1 = arith.constant 0 : i32
    return %c0_i32, %c0_i32_0 : i32, i32
  }
  func.func @transform_3(%arg0: i32) -> (i32, i32) {
    %c0_i32 = arith.constant 0 : i32
    %c0_i32_0 = arith.constant 0 : i32
    return %arg0, %c0_i32 : i32, i32
  }
}

</mosaic_0001>

<llo_original>
// kernel: _lambda_.1
$region0: #{_lambda_.1}
  #allocation0 [shape = 'u32[]', space=smem, size = 0x4, offset = 0x4, fixed_abs, tag = 'smem constant byte address 0x4 - core index']
  #allocation1 [shape = 'u32[144,128]{1,0:T(1,128)}', space=vmem, size = 0x12000, scoped, tag = 'internal scratch']
  %s0 = inlined_call_operand.vmem [shape: f32[32,32], index: 0, kind: input, shape index: {}]
  %s1 = inlined_call_operand.vmem [shape: f32[1,32], index: 1, kind: input, shape index: {}]
  %s2 = inlined_call_operand.vmem [shape: f32[1,32], index: 2, kind: input, shape index: {}]
  %s3 = inlined_call_operand.vmem [shape: f32[32,32], index: 3, kind: output, shape index: {}]
  %s4 = sld [smem:[#allocation0]]
  $region45: #{_lambda_.1} parent=0
    _
  %s6 = ssub.s32 1, %s4
  %s7 = scalar_select 0, %s6, %s4
  loop: start=0, step=1, limit=4
  $region2: #{_lambda_.1} parent=0 // loop_pre_header
    _
  $region3: #{_lambda_.1} parent=0 // loop_header
    %s9 = sphi 0, %s13
    %p10 = scmp.ge.s32.totalorder %s9, 4
    %s19 = sphi 0, %s21
    %s22 = sphi 0, %s19
    %s23 = sphi 0, %s22
    %s39 = sphi 0, %s23
    %s43 = sphi 0, %s43
    %s45 = sphi 0, %s43
    %s46 = sphi 0, %s45
    %s60 = sphi 0, %s46
    %s64 = sphi 0, %s64
    %s66 = sphi 0, %s64
    %s67 = sphi 0, %s66
    %s81 = sphi 0, %s67
    %s87 = sphi 0, %s89
    %s90 = sphi 0, %s87
    %s91 = sphi 0, %s90
    %s107 = sphi 0, %s91
  $region4: #{_lambda_.1} parent=0 // loop_header_branch
    %12 = sbr.rel (%p10) target = $region8
  $region5: #{_lambda_.1} parent=0 // loop_body
    %s14 = ssub.s32 %s9, 1
    %s15 = ssub.s32 %s9, 2
    %s16 = sadd.s32 %s9, 1
    %s17 = ssub.s32 %s9, %s16
    %p18 = scmp.eq.s32.totalorder %s17, 0
    %s20 = sadd.s32 %s19, 1
    %s21 = scalar_select %p18, %s19, %s20
    %p24 = pneg %p18
    %p25 = scmp.eq.s32.totalorder %s9, 1
    %p26 = por %p24, %p25
    %p27 = scmp.ne.s32.totalorder %s19, %s22
    %p28 = scmp.eq.s32.totalorder %s9, 0
    %p29 = por %p27, %p28
    %p30 = scmp.ne.s32.totalorder %s19, %s22
    %p31 = scmp.eq.s32.totalorder %s14, 1
    %p32 = por %p30, %p31
    %p33 = scmp.ne.s32.totalorder %s22, %s23
    %p34 = scmp.eq.s32.totalorder %s14, 0
    %p35 = por %p33, %p34
    %p36 = scmp.ne.s32.totalorder %s22, %s23
    %p37 = scmp.eq.s32.totalorder %s15, 1
    %p38 = por %p36, %p37
    %p40 = scmp.ne.s32.totalorder %s23, %s39
    %p41 = scmp.eq.s32.totalorder %s15, 0
    %p42 = por %p40, %p41
    %s44 = sadd.s32 %s43, 1
    %p47 = scmp.eq.s32.totalorder %s9, 1
    %p48 = scmp.ne.s32.totalorder %s43, %s45
    %p49 = scmp.eq.s32.totalorder %s9, 0
    %p50 = por %p48, %p49
    %p51 = scmp.ne.s32.totalorder %s43, %s45
    %p52 = scmp.eq.s32.totalorder %s14, 1
    %p53 = por %p51, %p52
    %p54 = scmp.ne.s32.totalorder %s45, %s46
    %p55 = scmp.eq.s32.totalorder %s14, 0
    %p56 = por %p54, %p55
    %p57 = scmp.ne.s32.totalorder %s45, %s46
    %p58 = scmp.eq.s32.totalorder %s15, 1
    %p59 = por %p57, %p58
    %p61 = scmp.ne.s32.totalorder %s46, %s60
    %p62 = scmp.eq.s32.totalorder %s15, 0
    %p63 = por %p61, %p62
    %s65 = sadd.s32 %s64, 1
    %p68 = scmp.eq.s32.totalorder %s9, 1
    %p69 = scmp.ne.s32.totalorder %s64, %s66
    %p70 = scmp.eq.s32.totalorder %s9, 0
    %p71 = por %p69, %p70
    %p72 = scmp.ne.s32.totalorder %s64, %s66
    %p73 = scmp.eq.s32.totalorder %s14, 1
    %p74 = por %p72, %p73
    %p75 = scmp.ne.s32.totalorder %s66, %s67
    %p76 = scmp.eq.s32.totalorder %s14, 0
    %p77 = por %p75, %p76
    %p78 = scmp.ne.s32.totalorder %s66, %s67
    %p79 = scmp.eq.s32.totalorder %s15, 1
    %p80 = por %p78, %p79
    %p82 = scmp.ne.s32.totalorder %s67, %s81
    %p83 = scmp.eq.s32.totalorder %s15, 0
    %p84 = por %p82, %p83
    %s85 = ssub.s32 %s9, %s16
    %p86 = scmp.eq.s32.totalorder %s85, 0
    %s88 = sadd.s32 %s87, 1
    %s89 = scalar_select %p86, %s87, %s88
    %p92 = pneg %p86
    %p93 = scmp.eq.s32.totalorder %s9, 1
    %p94 = por %p92, %p93
    %p95 = scmp.ne.s32.totalorder %s87, %s90
    %p96 = scmp.eq.s32.totalorder %s9, 0
    %p97 = por %p95, %p96
    %p98 = scmp.ne.s32.totalorder %s87, %s90
    %p99 = scmp.eq.s32.totalorder %s14, 1
    %p100 = por %p98, %p99
    %p101 = scmp.ne.s32.totalorder %s90, %s91
    %p102 = scmp.eq.s32.totalorder %s14, 0
    %p103 = por %p101, %p102
    %p104 = scmp.ne.s32.totalorder %s90, %s91
    %p105 = scmp.eq.s32.totalorder %s15, 1
    %p106 = por %p104, %p105
    %p108 = scmp.ne.s32.totalorder %s91, %s107
    %p109 = scmp.eq.s32.totalorder %s15, 0
    %p110 = por %p108, %p109
    %p111 = scmp.le.s32.totalorder 1, %s9
    %p112 = scmp.lt.s32.totalorder %s9, 3
    %p113 = pnand %p111, %p112
    %p114 = pneg %p113
    // Predicated region
    $region9: #{_lambda_.1} parent=5 // pred_check
      _
    $region10: #{_lambda_.1} parent=5 // pred_check_branch
      %116 = sbr.rel (%p113) target = $region12
    $region11: #{_lambda_.1} parent=5 // pred_region
      %s117 = ssub.s32 %s9, 1
      // Predicated region
      $region13: #{_lambda_.1} parent=11 // pred_check
        %p118 = pneg %p56
      $region14: #{_lambda_.1} parent=11 // pred_check_branch
        %120 = sbr.rel (%p118) target = $region16
      $region15: #{_lambda_.1} parent=11 // pred_region
        _
      $region16: #{_lambda_.1} parent=11 // pred_fallthru
        _
      // Predicated region
      $region17: #{_lambda_.1} parent=11 // pred_check
        %p121 = pneg %p77
      $region18: #{_lambda_.1} parent=11 // pred_check_branch
        %123 = sbr.rel (%p121) target = $region20
      $region19: #{_lambda_.1} parent=11 // pred_region
        _
      $region20: #{_lambda_.1} parent=11 // pred_fallthru
        _
    $region12: #{_lambda_.1} parent=5 // pred_fallthru
      _
    %p124 = scmp.lt.s32.totalorder %s9, 2
    // Predicated region
    $region21: #{_lambda_.1} parent=5 // pred_check
      %p125 = pneg %p124
    $region22: #{_lambda_.1} parent=5 // pred_check_branch
      %127 = sbr.rel (%p125) target = $region24
    $region23: #{_lambda_.1} parent=5 // pred_region
      // Predicated region
      $region25: #{_lambda_.1} parent=23 // pred_check
        %p128 = pneg %p29
      $region26: #{_lambda_.1} parent=23 // pred_check_branch
        %130 = sbr.rel (%p128) target = $region28
      $region27: #{_lambda_.1} parent=23 // pred_region
        %s131 = smul.u32 2, %s9
        %p132 = scmp.lt.s32.totalorder %s131, 3
        %s133 = scalar_select %p132, %s131, 3
        %s134 = smul.addr %s133, 8
        %s135 = scalar_lea.vmem %s0, %s134
        %s136 = smul.u32 2, %s9
      $region28: #{_lambda_.1} parent=23 // pred_fallthru
        _
    $region24: #{_lambda_.1} parent=5 // pred_fallthru
      _
    %p137 = scmp.le.s32.totalorder 1, %s9
    %p138 = scmp.lt.s32.totalorder %s9, 3
    %p139 = pnand %p137, %p138
    %p140 = pneg %p139
    // Predicated region
    $region29: #{_lambda_.1} parent=5 // pred_check
      _
    $region30: #{_lambda_.1} parent=5 // pred_check_branch
      %142 = sbr.rel (%p139) target = $region32
    $region31: #{_lambda_.1} parent=5 // pred_region
      %s143 = ssub.s32 %s9, 1
      %s144 = smul.u32 2, %s14
      %p145 = scmp.lt.s32.totalorder %s144, 3
      %s146 = scalar_select %p145, %s144, 3
      %s147 = smul.addr %s146, 8
      %s148 = scalar_lea.vmem %s0, %s147
      %p149 = pneg %p35
      %p150 = pneg %p32
      %p151 = pneg %p56
      %p152 = pneg %p53
      %p153 = pneg %p77
      %p154 = pneg %p74
      %p155 = pneg %p103
      %p156 = pneg %p100
      %s157 = smul.u32 2, %s14
      %p158 = scmp.lt.s32.totalorder %s157, 3
      %s159 = scalar_select %p158, %s157, 3
      %s160 = smul.addr %s159, 8
      %s161 = scalar_lea.vmem %s3, %s160
      %s162 = smul.u32 2, %s14
      %p163 = scmp.lt.s32.totalorder %s162, 3
      %s164 = scalar_select %p163, %s162, 3
      %s165 = smul.addr %s164, 8
      %s166 = scalar_lea.vmem %s0, %s165
      %s167 = smul.u32 2, %s14
      %s168 = smul.u32 2, %s14
      %p169 = scmp.lt.s32.totalorder %s168, 3
      %s170 = scalar_select %p169, %s168, 3
      %s171 = smul.addr %s170, 8
      %s172 = scalar_lea.vmem %s3, %s171
      %s173 = smul.u32 2, %s14
      %v174 = vld [vmem:[%s166] sm:$0xff]
      %v175 = vld [vmem:[%s166 + $0x8] sm:$0xff]
      %vm176 = vcmask 261120
      %v177 = vsel %vm176, %v174, 0.0
      %178 = vadd.xlane.f32.xlu0 %v177
      %v179 = vpop.xlane.xlu0 %178
      %v180 = vsel %vm176, %v175, 0.0
      %181 = vadd.xlane.f32.xlu0 %v180
      %v182 = vpop.xlane.xlu0 %181
      %v183 = vrcp.pop 32.0
      %v184 = vmul.f32 %v179, %v183
      %v185 = vmul.f32 %v182, %v183
      %v186 = vmul.f32 %v174, %v174
      %v187 = vmul.f32 %v175, %v175
      %v188 = vsel %vm176, %v186, 0.0
      %189 = vadd.xlane.f32.xlu0 %v188
      %v190 = vpop.xlane.xlu0 %189
      %v191 = vsel %vm176, %v187, 0.0
      %192 = vadd.xlane.f32.xlu0 %v191
      %v193 = vpop.xlane.xlu0 %192
      %v194 = vmul.f32 %v190, %v183
      %v195 = vmul.f32 %v193, %v183
      %v196 = vmul.f32 %v184, %v184
      %v197 = vmul.f32 %v185, %v185
      %v198 = vsub.f32 %v194, %v196
      %v199 = vsub.f32 %v195, %v197
      %v200 = vadd.f32 %v198, 1e-05
      %v201 = vadd.f32 %v199, 1e-05
      %v202 = vrsqrt.pop %v200
      %v203 = vrsqrt.pop %v201
      %v204 = vsub.f32 %v174, %v184
      %v205 = vsub.f32 %v175, %v185
      %v206 = vmul.f32 %v204, %v202
      %v207 = vmul.f32 %v205, %v203
      %v208 = vld [vmem:[%s1] sm:$0x1]
      %v210 = vlaneseq
      %v211 = vshrl.u32 %v210, 7
      %v212 = vsub.s32 0, %v211
      %v213 = vrot.slane %v208, %v212
      %v215 = vmul.f32 %v206, %v213
      %v216 = vmul.f32 %v207, %v213
      %v217 = vld [vmem:[%s2] sm:$0x1]
      %v219 = vlaneseq
      %v220 = vshrl.u32 %v219, 7
      %v221 = vsub.s32 0, %v220
      %v222 = vrot.slane %v217, %v221
      %v224 = vadd.f32 %v215, %v222
      %v225 = vadd.f32 %v216, %v222
      %226 = vst.msk [vmem:[%s172] sm:$0xff] %vm176, %v224
      %227 = vst.msk [vmem:[%s172 + $0x8] sm:$0xff] %vm176, %v225
      %s228 = smul.u32 2, %s14
      %p229 = scmp.lt.s32.totalorder %s228, 3
      %s230 = scalar_select %p229, %s228, 3
      %s231 = smul.addr %s230, 8
      %s232 = scalar_lea.vmem %s3, %s231
      // Predicated region
      $region33: #{_lambda_.1} parent=31 // pred_check
        %p233 = pneg %p100
      $region34: #{_lambda_.1} parent=31 // pred_check_branch
        %235 = sbr.rel (%p233) target = $region36
      $region35: #{_lambda_.1} parent=31 // pred_region
        %s236 = smul.u32 2, %s14
      $region36: #{_lambda_.1} parent=31 // pred_fallthru
        _
    $region32: #{_lambda_.1} parent=5 // pred_fallthru
      _
    %p237 = scmp.le.s32.totalorder 2, %s9
    // Predicated region
    $region37: #{_lambda_.1} parent=5 // pred_check
      %p238 = pneg %p237
    $region38: #{_lambda_.1} parent=5 // pred_check_branch
      %240 = sbr.rel (%p238) target = $region40
    $region39: #{_lambda_.1} parent=5 // pred_region
      %s241 = ssub.s32 %s9, 2
      // Predicated region
      $region41: #{_lambda_.1} parent=39 // pred_check
        %p242 = pneg %p106
      $region42: #{_lambda_.1} parent=39 // pred_check_branch
        %244 = sbr.rel (%p242) target = $region44
      $region43: #{_lambda_.1} parent=39 // pred_region
        %s245 = smul.u32 2, %s15
        %p246 = scmp.lt.s32.totalorder %s245, 3
        %s247 = scalar_select %p246, %s245, 3
        %s248 = smul.addr %s247, 8
        %s249 = scalar_lea.vmem %s3, %s248
      $region44: #{_lambda_.1} parent=39 // pred_fallthru
        _
    $region40: #{_lambda_.1} parent=5 // pred_fallthru
      _
  $region6: #{_lambda_.1} parent=0 // loop_footer
    %s13 = sadd.s32 1, %s9
  $region7: #{_lambda_.1} parent=0 // loop_footer_branch
    %8 = sbr.rel target = $region3
  $region8: #{_lambda_.1} parent=0 // loop_exit
    _

</llo_original>
